<compile_context>
chip_gen: v7x
topology: tpu7x:2x2x1
jax: 0.10.0
libtpu: 0.0.40
codegen_flags: <defaults>
</compile_context>

<pallas_src>
import functools

import jax
import jax.numpy as jnp
from jax.experimental import pallas as pl
from jax.experimental.pallas import tpu as pltpu

LANES = 128
MAX_TILE_ROWS = 1024  # 6 ch * 1024 * 128 * 4 B = 3 MiB/block, 6 MiB double-buffered


def _round_up(x, m):
    return ((x + m - 1) // m) * m


def focal_loss_kernel(x_ref, out_ref, *, threshold):
    # x_ref: (6, T, 128) block of stacked channels
    #   0: mark, 1: cos_pred, 2: sin_pred, 3: mark_gt, 4: cos_gt, 5: sin_gt
    mark = x_ref[0].astype(jnp.float32)
    cosp = x_ref[1].astype(jnp.float32)
    sinp = x_ref[2].astype(jnp.float32)
    mgt = x_ref[3].astype(jnp.float32)
    cgt = x_ref[4].astype(jnp.float32)
    sgt = x_ref[5].astype(jnp.float32)

    pos = mgt > threshold          # mark_gt.gt(threshold)
    neg = jnp.logical_not(pos)     # mark_gt.le(threshold)
    zero = jnp.zeros_like(mark)

    npos_map = (mgt == 1.0).astype(jnp.float32)                     # mark_gt.eq(1)
    pos_loss = jnp.where(pos, (mgt - mark) ** 2 * jnp.log(mark), zero)
    neg_loss = jnp.where(
        neg, mark * mark * jnp.log1p(-mark) * (1.0 - mgt) ** 4, zero)
    cos_loss = jnp.where(pos, (cgt - cosp) ** 2, zero)
    sin_loss = jnp.where(pos, (sgt - sinp) ** 2, zero)
    const_loss = jnp.where(pos, (1.0 - cosp * cosp - sinp * sinp) ** 2, zero)

    t = mark.shape[0]

    def part(m):  # (T, 128) -> (8, 128): in-register tree of vreg adds (VPU only)
        return jnp.sum(m.reshape(t // 8, 8, LANES), axis=0)

    out_ref[0, 0] = part(npos_map)
    out_ref[0, 1] = part(pos_loss)
    out_ref[0, 2] = part(neg_loss)
    out_ref[0, 3] = part(cos_loss)
    out_ref[0, 4] = part(sin_loss)
    out_ref[0, 5] = part(const_loss)


def focal_loss_with_trigonometric(mark, direction, gt, *, threshold=0.1,
                                  pos=2, neg=0.1, cos=1, sin=1, const=4):
    B, _, H, W = mark.shape
    n = B * H * W

    # Single repack: stack the 6 per-pixel channels, pad once, make lane-dense.
    # Padding (mark = 0, mark_gt = 0) contributes exactly 0 to every loss term.
    stacked = jnp.stack([mark[:, 0], direction[:, 0], direction[:, 1],
                         gt[:, 0], gt[:, 1], gt[:, 2]]).reshape(6, n)

    rows_min = _round_up(-(-n // LANES), 8)
    tile_rows = min(MAX_TILE_ROWS, rows_min)
    rows = _round_up(rows_min, tile_rows)
    pad = rows * LANES - n
    if pad:
        stacked = jnp.pad(stacked, ((0, 0), (0, pad)))
    stacked = stacked.reshape(6, rows, LANES)

    num_blocks = rows // tile_rows
    elems = rows * LANES

    kernel = functools.partial(focal_loss_kernel, threshold=float(threshold))

    partials = pl.pallas_call(
        kernel,
        out_shape=jax.ShapeDtypeStruct((num_blocks, 6, 8, LANES), jnp.float32),
        grid=(num_blocks,),
        in_specs=[pl.BlockSpec((6, tile_rows, LANES), lambda i: (0, i, 0))],
        out_specs=pl.BlockSpec((1, 6, 8, LANES), lambda i: (i, 0, 0, 0)),
        compiler_params=pltpu.CompilerParams(
            dimension_semantics=("parallel",)),
        cost_estimate=pl.CostEstimate(
            flops=25 * elems,
            transcendentals=2 * elems,
            bytes_accessed=6 * elems * stacked.dtype.itemsize
            + num_blocks * 6 * 8 * LANES * 4),
    )(stacked)

    # Tiny final reduction + weighting done outside the kernel.
    sums = jnp.sum(partials, axis=(0, 2, 3))  # (6,)
    n_pos = sums[0]
    # TODO(synk): n_pos == 0 yields inf/NaN, identical to the PyTorch reference.
    return (-float(pos) * sums[1] / n_pos
            + -float(neg) * sums[2]
            + float(cos) * sums[3] / n_pos
            + float(sin) * sums[4] / n_pos
            + float(const) * sums[5] / n_pos)


def reference_loss(mark, direction, gt, *, threshold=0.1, pos=2, neg=0.1,
                   cos=1, sin=1, const=4):
    mgt = gt[:, 0:1].astype(jnp.float32)
    m = mark.astype(jnp.float32)
    cp = direction[:, 0:1].astype(jnp.float32)
    sp = direction[:, 1:2].astype(jnp.float32)
    cg = gt[:, 1:2].astype(jnp.float32)
    sg = gt[:, 2:3].astype(jnp.float32)
    num_pos = jnp.sum((mgt == 1.0).astype(jnp.float32))
    pm = mgt > threshold
    nm = jnp.logical_not(pm)
    z = jnp.zeros_like(m)
    pos_sum = jnp.sum(jnp.where(pm, (mgt - m) ** 2 * jnp.log(m), z))
    neg_sum = jnp.sum(jnp.where(nm, m ** 2 * jnp.log(1 - m) * (1 - mgt) ** 4, z))
    cos_sum = jnp.sum(jnp.where(pm, (cg - cp) ** 2, z))
    sin_sum = jnp.sum(jnp.where(pm, (sg - sp) ** 2, z))
    const_sum = jnp.sum(jnp.where(pm, (1 - cp ** 2 - sp ** 2) ** 2, z))
    return (-pos * pos_sum / num_pos + -neg * neg_sum
            + cos * cos_sum / num_pos + sin * sin_sum / num_pos
            + const * const_sum / num_pos)


if __name__ == "__main__":
    key = jax.random.PRNGKey(0)
    k1, k2, k3, k4 = jax.random.split(key, 4)
    B, H, W = 2, 16, 16

    # mark: sigmoid-like prediction strictly inside (0, 1) so log terms are finite
    mark = jax.nn.sigmoid(jax.random.normal(k1, (B, 1, H, W))) * 0.98 + 0.01
    angle = jax.random.uniform(k2, (B, 1, H, W), minval=0.0, maxval=2 * jnp.pi)
    direction = jnp.concatenate([jnp.cos(angle), jnp.sin(angle)], axis=1)

    u = jax.random.uniform(k3, (B, 1, H, W))
    # some exact 1.0 positives (counted by num_pos), some soft positives, rest negatives
    mark_gt = jnp.where(u > 0.9, 1.0, jnp.where(u > 0.8, u, 0.0))
    angle_gt = jax.random.uniform(k4, (B, 1, H, W), minval=0.0, maxval=2 * jnp.pi)
    gt = jnp.concatenate([mark_gt, jnp.cos(angle_gt), jnp.sin(angle_gt)], axis=1)

    loss = focal_loss_with_trigonometric(mark, direction, gt)
    loss = jax.block_until_ready(loss)

    ref = reference_loss(mark, direction, gt)
    assert jnp.allclose(loss, ref, rtol=1e-5, atol=1e-5), (loss, ref)
    print("KERNEL_OK")
</pallas_src>

<mosaic_0001>
module attributes {stable_mosaic.version = 11 : i64} {
  func.func @focal_loss_kernel(%arg0: i32, %arg1: memref<6x8x128xf32, #tpu.memory_space<vmem>>, %arg2: memref<1x6x8x128xf32, #tpu.memory_space<vmem>>) attributes {dimension_semantics = [#tpu.dimension_semantics<parallel>], iteration_bounds = array<i64: 1>, scalar_prefetch = 0 : i64, scratch_operands = 0 : i64, tpu.core_type = #tpu.core_type<tc>, window_params = [{transform_indices = @transform_0, window_bounds = array<i64: 6, 8, 128>}, {transform_indices = @transform_1, window_bounds = array<i64: 1, 6, 8, 128>}]} {
    %c0 = arith.constant 0 : index
    %c0_0 = arith.constant 0 : index
    %c0_1 = arith.constant 0 : index
    %0 = vector.load %arg1[%c0, %c0_0, %c0_1] : memref<6x8x128xf32, #tpu.memory_space<vmem>>, vector<1x8x128xf32>
    %1 = vector.shape_cast %0 : vector<1x8x128xf32> to vector<8x128xf32>
    %c1 = arith.constant 1 : index
    %c0_2 = arith.constant 0 : index
    %c0_3 = arith.constant 0 : index
    %2 = vector.load %arg1[%c1, %c0_2, %c0_3] : memref<6x8x128xf32, #tpu.memory_space<vmem>>, vector<1x8x128xf32>
    %3 = vector.shape_cast %2 : vector<1x8x128xf32> to vector<8x128xf32>
    %c2 = arith.constant 2 : index
    %c0_4 = arith.constant 0 : index
    %c0_5 = arith.constant 0 : index
    %4 = vector.load %arg1[%c2, %c0_4, %c0_5] : memref<6x8x128xf32, #tpu.memory_space<vmem>>, vector<1x8x128xf32>
    %5 = vector.shape_cast %4 : vector<1x8x128xf32> to vector<8x128xf32>
    %c3 = arith.constant 3 : index
    %c0_6 = arith.constant 0 : index
    %c0_7 = arith.constant 0 : index
    %6 = vector.load %arg1[%c3, %c0_6, %c0_7] : memref<6x8x128xf32, #tpu.memory_space<vmem>>, vector<1x8x128xf32>
    %7 = vector.shape_cast %6 : vector<1x8x128xf32> to vector<8x128xf32>
    %c4 = arith.constant 4 : index
    %c0_8 = arith.constant 0 : index
    %c0_9 = arith.constant 0 : index
    %8 = vector.load %arg1[%c4, %c0_8, %c0_9] : memref<6x8x128xf32, #tpu.memory_space<vmem>>, vector<1x8x128xf32>
    %9 = vector.shape_cast %8 : vector<1x8x128xf32> to vector<8x128xf32>
    %c5 = arith.constant 5 : index
    %c0_10 = arith.constant 0 : index
    %c0_11 = arith.constant 0 : index
    %10 = vector.load %arg1[%c5, %c0_10, %c0_11] : memref<6x8x128xf32, #tpu.memory_space<vmem>>, vector<1x8x128xf32>
    %11 = vector.shape_cast %10 : vector<1x8x128xf32> to vector<8x128xf32>
    %cst = arith.constant 1.000000e-01 : f32
    %12 = vector.broadcast %cst : f32 to vector<8x128xf32>
    %13 = arith.cmpf ogt, %7, %12 : vector<8x128xf32>
    %cst_12 = arith.constant dense<true> : vector<8x128xi1>
    %14 = arith.xori %13, %cst_12 : vector<8x128xi1>
    %cst_13 = arith.constant 0.000000e+00 : f32
    %15 = vector.broadcast %cst_13 : f32 to vector<8x128xf32>
    %cst_14 = arith.constant 1.000000e+00 : f32
    %16 = vector.broadcast %cst_14 : f32 to vector<8x128xf32>
    %17 = arith.cmpf oeq, %7, %16 : vector<8x128xf32>
    %18 = arith.extui %17 : vector<8x128xi1> to vector<8x128xi32>
    %19 = arith.sitofp %18 : vector<8x128xi32> to vector<8x128xf32>
    %20 = arith.subf %7, %1 : vector<8x128xf32>
    %21 = arith.mulf %20, %20 : vector<8x128xf32>
    %22 = math.log %1 : vector<8x128xf32>
    %23 = arith.mulf %21, %22 : vector<8x128xf32>
    %24 = arith.select %13, %23, %15 : vector<8x128xi1>, vector<8x128xf32>
    %25 = arith.mulf %1, %1 : vector<8x128xf32>
    %cst_15 = arith.constant 0.000000e+00 : f32
    %26 = vector.broadcast %cst_15 : f32 to vector<8x128xf32>
    %27 = arith.subf %26, %1 : vector<8x128xf32>
    %28 = math.log1p %27 : vector<8x128xf32>
    %29 = arith.mulf %25, %28 : vector<8x128xf32>
    %cst_16 = arith.constant 1.000000e+00 : f32
    %30 = vector.broadcast %cst_16 : f32 to vector<8x128xf32>
    %31 = arith.subf %30, %7 : vector<8x128xf32>
    %32 = arith.mulf %31, %31 : vector<8x128xf32>
    %33 = arith.mulf %32, %32 : vector<8x128xf32>
    %34 = arith.mulf %29, %33 : vector<8x128xf32>
    %35 = arith.select %14, %34, %15 : vector<8x128xi1>, vector<8x128xf32>
    %36 = arith.subf %9, %3 : vector<8x128xf32>
    %37 = arith.mulf %36, %36 : vector<8x128xf32>
    %38 = arith.select %13, %37, %15 : vector<8x128xi1>, vector<8x128xf32>
    %39 = arith.subf %11, %5 : vector<8x128xf32>
    %40 = arith.mulf %39, %39 : vector<8x128xf32>
    %41 = arith.select %13, %40, %15 : vector<8x128xi1>, vector<8x128xf32>
    %42 = arith.mulf %3, %3 : vector<8x128xf32>
    %cst_17 = arith.constant 1.000000e+00 : f32
    %43 = vector.broadcast %cst_17 : f32 to vector<8x128xf32>
    %44 = arith.subf %43, %42 : vector<8x128xf32>
    %45 = arith.mulf %5, %5 : vector<8x128xf32>
    %46 = arith.subf %44, %45 : vector<8x128xf32>
    %47 = arith.mulf %46, %46 : vector<8x128xf32>
    %48 = arith.select %13, %47, %15 : vector<8x128xi1>, vector<8x128xf32>
    %49 = vector.shape_cast %19 : vector<8x128xf32> to vector<1x8x128xf32>
    %cst_18 = arith.constant dense<0.000000e+00> : vector<8x128xf32>
    %50 = vector.multi_reduction <add>, %49, %cst_18 [0] : vector<1x8x128xf32> to vector<8x128xf32>
    %c0_19 = arith.constant 0 : index
    %c0_20 = arith.constant 0 : index
    %c0_21 = arith.constant 0 : index
    %c0_22 = arith.constant 0 : index
    %51 = vector.load %arg2[%c0_19, %c0_20, %c0_21, %c0_22] : memref<1x6x8x128xf32, #tpu.memory_space<vmem>>, vector<1x1x8x128xf32>
    %52 = vector.shape_cast %51 : vector<1x1x8x128xf32> to vector<8x128xf32>
    %53 = vector.shape_cast %50 : vector<8x128xf32> to vector<1x1x8x128xf32>
    tpu.vector_store %arg2[%c0_19, %c0_20, %c0_21, %c0_22], %53 {strides = array<i32>} : memref<1x6x8x128xf32, #tpu.memory_space<vmem>>, vector<1x1x8x128xf32>,
    %54 = vector.shape_cast %24 : vector<8x128xf32> to vector<1x8x128xf32>
    %cst_23 = arith.constant dense<0.000000e+00> : vector<8x128xf32>
    %55 = vector.multi_reduction <add>, %54, %cst_23 [0] : vector<1x8x128xf32> to vector<8x128xf32>
    %c0_24 = arith.constant 0 : index
    %c1_25 = arith.constant 1 : index
    %c0_26 = arith.constant 0 : index
    %c0_27 = arith.constant 0 : index
    %56 = vector.load %arg2[%c0_24, %c1_25, %c0_26, %c0_27] : memref<1x6x8x128xf32, #tpu.memory_space<vmem>>, vector<1x1x8x128xf32>
    %57 = vector.shape_cast %56 : vector<1x1x8x128xf32> to vector<8x128xf32>
    %58 = vector.shape_cast %55 : vector<8x128xf32> to vector<1x1x8x128xf32>
    tpu.vector_store %arg2[%c0_24, %c1_25, %c0_26, %c0_27], %58 {strides = array<i32>} : memref<1x6x8x128xf32, #tpu.memory_space<vmem>>, vector<1x1x8x128xf32>,
    %59 = vector.shape_cast %35 : vector<8x128xf32> to vector<1x8x128xf32>
    %cst_28 = arith.constant dense<0.000000e+00> : vector<8x128xf32>
    %60 = vector.multi_reduction <add>, %59, %cst_28 [0] : vector<1x8x128xf32> to vector<8x128xf32>
    %c0_29 = arith.constant 0 : index
    %c2_30 = arith.constant 2 : index
    %c0_31 = arith.constant 0 : index
    %c0_32 = arith.constant 0 : index
    %61 = vector.load %arg2[%c0_29, %c2_30, %c0_31, %c0_32] : memref<1x6x8x128xf32, #tpu.memory_space<vmem>>, vector<1x1x8x128xf32>
    %62 = vector.shape_cast %61 : vector<1x1x8x128xf32> to vector<8x128xf32>
    %63 = vector.shape_cast %60 : vector<8x128xf32> to vector<1x1x8x128xf32>
    tpu.vector_store %arg2[%c0_29, %c2_30, %c0_31, %c0_32], %63 {strides = array<i32>} : memref<1x6x8x128xf32, #tpu.memory_space<vmem>>, vector<1x1x8x128xf32>,
    %64 = vector.shape_cast %38 : vector<8x128xf32> to vector<1x8x128xf32>
    %cst_33 = arith.constant dense<0.000000e+00> : vector<8x128xf32>
    %65 = vector.multi_reduction <add>, %64, %cst_33 [0] : vector<1x8x128xf32> to vector<8x128xf32>
    %c0_34 = arith.constant 0 : index
    %c3_35 = arith.constant 3 : index
    %c0_36 = arith.constant 0 : index
    %c0_37 = arith.constant 0 : index
    %66 = vector.load %arg2[%c0_34, %c3_35, %c0_36, %c0_37] : memref<1x6x8x128xf32, #tpu.memory_space<vmem>>, vector<1x1x8x128xf32>
    %67 = vector.shape_cast %66 : vector<1x1x8x128xf32> to vector<8x128xf32>
    %68 = vector.shape_cast %65 : vector<8x128xf32> to vector<1x1x8x128xf32>
    tpu.vector_store %arg2[%c0_34, %c3_35, %c0_36, %c0_37], %68 {strides = array<i32>} : memref<1x6x8x128xf32, #tpu.memory_space<vmem>>, vector<1x1x8x128xf32>,
    %69 = vector.shape_cast %41 : vector<8x128xf32> to vector<1x8x128xf32>
    %cst_38 = arith.constant dense<0.000000e+00> : vector<8x128xf32>
    %70 = vector.multi_reduction <add>, %69, %cst_38 [0] : vector<1x8x128xf32> to vector<8x128xf32>
    %c0_39 = arith.constant 0 : index
    %c4_40 = arith.constant 4 : index
    %c0_41 = arith.constant 0 : index
    %c0_42 = arith.constant 0 : index
    %71 = vector.load %arg2[%c0_39, %c4_40, %c0_41, %c0_42] : memref<1x6x8x128xf32, #tpu.memory_space<vmem>>, vector<1x1x8x128xf32>
    %72 = vector.shape_cast %71 : vector<1x1x8x128xf32> to vector<8x128xf32>
    %73 = vector.shape_cast %70 : vector<8x128xf32> to vector<1x1x8x128xf32>
    tpu.vector_store %arg2[%c0_39, %c4_40, %c0_41, %c0_42], %73 {strides = array<i32>} : memref<1x6x8x128xf32, #tpu.memory_space<vmem>>, vector<1x1x8x128xf32>,
    %74 = vector.shape_cast %48 : vector<8x128xf32> to vector<1x8x128xf32>
    %cst_43 = arith.constant dense<0.000000e+00> : vector<8x128xf32>
    %75 = vector.multi_reduction <add>, %74, %cst_43 [0] : vector<1x8x128xf32> to vector<8x128xf32>
    %c0_44 = arith.constant 0 : index
    %c5_45 = arith.constant 5 : index
    %c0_46 = arith.constant 0 : index
    %c0_47 = arith.constant 0 : index
    %76 = vector.load %arg2[%c0_44, %c5_45, %c0_46, %c0_47] : memref<1x6x8x128xf32, #tpu.memory_space<vmem>>, vector<1x1x8x128xf32>
    %77 = vector.shape_cast %76 : vector<1x1x8x128xf32> to vector<8x128xf32>
    %78 = vector.shape_cast %75 : vector<8x128xf32> to vector<1x1x8x128xf32>
    tpu.vector_store %arg2[%c0_44, %c5_45, %c0_46, %c0_47], %78 {strides = array<i32>} : memref<1x6x8x128xf32, #tpu.memory_space<vmem>>, vector<1x1x8x128xf32>,
    return
  }
  func.func @transform_0(%arg0: i32) -> (i32, i32, i32) {
    %c0_i32 = arith.constant 0 : i32
    %c0_i32_0 = arith.constant 0 : i32
    %c0_i32_1 = arith.constant 0 : i32
    return %c0_i32, %arg0, %c0_i32_0 : i32, i32, i32
  }
  func.func @transform_1(%arg0: i32) -> (i32, i32, i32, i32) {
    %c0_i32 = arith.constant 0 : i32
    %c0_i32_0 = arith.constant 0 : i32
    %c0_i32_1 = arith.constant 0 : i32
    %c0_i32_2 = arith.constant 0 : i32
    return %arg0, %c0_i32, %c0_i32_0, %c0_i32_1 : i32, i32, i32, i32
  }
}

</mosaic_0001>

<llo_original>
// kernel: tpu_custom_call.1
$region0: #{tpu_custom_call.1}
  #allocation0 [shape = 'u32[]', space=smem, size = 0x4, offset = 0x4, fixed_abs, tag = 'smem constant byte address 0x4 - core index']
  #allocation1 [shape = 'u32[144,128]{1,0:T(1,128)}', space=vmem, size = 0x12000, scoped, tag = 'internal scratch']
  %s0 = inlined_call_operand.hbm [shape: f32[6,8,128], index: 0, kind: input, shape index: {}]
  %s1 = inlined_call_operand.hbm [shape: f32[1,6,8,128], index: 1, kind: output, shape index: {}]
  %s2 = sld [smem:[#allocation0]]
  $region18: #{tpu_custom_call.1} parent=0
    _
  %s4 = ssub.s32 1, %s2
  %s5 = scalar_select 0, %s4, %s2
  $region1: #{tpu_custom_call.1} parent=0
    #allocation2 [shape = 'u8[24576]{0}', space=vmem, size = 0x6000, scoped, tag = 'input window, operand 0, single buffered']
    #allocation3 [shape = 's32[1]{0}', space=sflag, size = 0x4, scoped, tag = 'scoped memory for tpu_custom_call.1']
    #allocation4 [shape = 's32[1]{0}', space=sflag, size = 0x4, scoped, tag = 'scoped memory for tpu_custom_call.1']
    #allocation5 [shape = 'u8[24576]{0}', space=vmem, size = 0x6000, scoped, tag = 'output window, operand 0, single buffered']
    %6 = vsyncpa [#allocation3], 0
    %7 = vsyncpa [#allocation4], 0
    // Predicated region
    $region2: #{tpu_custom_call.1} parent=1 // pred_check
      _
    $region3: #{tpu_custom_call.1} parent=1 // pred_check_branch
      %9 = sbr.rel (0) target = $region5
    $region4: #{tpu_custom_call.1} parent=1 // pred_region
      %s11 = ssub.s32 768, 768
      %12 = vsyncadd [#allocation3], %s11
      %s13 = sshll.u32 [#allocation2], 4
      %s14 = int_to_ptr.vmem [resolvable:$true] %s13
      %19 = dma.hbm_to_vmem [thread:$0]  %s0, 768, %s14, [#allocation3], 128, 128, 8
    $region5: #{tpu_custom_call.1} parent=1 // pred_fallthru
      _
    // Predicated region
    $region6: #{tpu_custom_call.1} parent=1 // pred_check
      _
    $region7: #{tpu_custom_call.1} parent=1 // pred_check_branch
      %21 = sbr.rel (0) target = $region9
    $region8: #{tpu_custom_call.1} parent=1 // pred_region
      %22 = dma.done [#allocation3], 768
    $region9: #{tpu_custom_call.1} parent=1 // pred_fallthru
      _
    %v23 = vld [vmem:[#allocation2] sm:$0xff]
    %s24 = scalar_lea.vmem [#allocation2], 8
    %v25 = vld [vmem:[%s24] sm:$0xff]
    %s26 = scalar_lea.vmem [#allocation2], 16
    %v27 = vld [vmem:[%s26] sm:$0xff]
    %s28 = scalar_lea.vmem [#allocation2], 24
    %v29 = vld [vmem:[%s28] sm:$0xff]
    %s30 = scalar_lea.vmem [#allocation2], 32
    %v31 = vld [vmem:[%s30] sm:$0xff]
    %s32 = scalar_lea.vmem [#allocation2], 40
    %v33 = vld [vmem:[%s32] sm:$0xff]
    %vm34 = vcmp.gt.f32.partialorder %v29, 0.1
    %vm35 = vmxor %vm34, 1
    %vm36 = vcmp.eq.f32.partialorder %v29, 1.0
    %v37 = vsel %vm36, 1, 0
    %v38 = vcvt.s32.f32 %v37
    %v39 = vsub.f32 %v29, %v23
    %v40 = vmul.f32 %v39, %v39
    %v41 = vlog2.pop %v23
    %v42 = vmul.f32 %v41, 0.6931472
    %v43 = vmul.f32 %v40, %v42
    %v44 = vsel %vm34, %v43, 0.0
    %v45 = vmul.f32 %v23, %v23
    %v46 = vsub.f32 0.0, %v23
    %v47 = vadd.f32 %v46, 1.0
    %v48 = vlog2.pop %v47
    %v49 = vmul.f32 %v48, 0.6931472
    %v50 = vmul.f32 -0.5, %v46
    %v51 = vadd.f32 %v50, 1.0
    %v52 = vmul.f32 %v51, %v46
    %v53 = vand.u32 2147483647, %v46
    %vm54 = vcmp.lt.f32.partialorder %v53, 0.0004427343
    %v55 = vsel %vm54, %v52, %v49
    %v56 = vmul.f32 %v45, %v55
    %v57 = vsub.f32 1.0, %v29
    %v58 = vmul.f32 %v57, %v57
    %v59 = vmul.f32 %v58, %v58
    %v60 = vmul.f32 %v56, %v59
    %v61 = vsel %vm35, %v60, 0.0
    %v62 = vsub.f32 %v31, %v25
    %v63 = vmul.f32 %v62, %v62
    %v64 = vsel %vm34, %v63, 0.0
    %v65 = vsub.f32 %v33, %v27
    %v66 = vmul.f32 %v65, %v65
    %v67 = vsel %vm34, %v66, 0.0
    %v68 = vmul.f32 %v25, %v25
    %v69 = vsub.f32 1.0, %v68
    %v70 = vmul.f32 %v27, %v27
    %v71 = vsub.f32 %v69, %v70
    %v72 = vmul.f32 %v71, %v71
    %v73 = vsel %vm34, %v72, 0.0
    %v74 = vadd.f32 %v38, 0.0
    %75 = vst [vmem:[#allocation5] sm:$0xff] %v74
    %v76 = vadd.f32 %v44, 0.0
    %s77 = scalar_lea.vmem [#allocation5], 8
    %78 = vst [vmem:[%s77] sm:$0xff] %v76
    %v79 = vadd.f32 %v61, 0.0
    %s80 = scalar_lea.vmem [#allocation5], 16
    %81 = vst [vmem:[%s80] sm:$0xff] %v79
    %v82 = vadd.f32 %v64, 0.0
    %s83 = scalar_lea.vmem [#allocation5], 24
    %84 = vst [vmem:[%s83] sm:$0xff] %v82
    %v85 = vadd.f32 %v67, 0.0
    %s86 = scalar_lea.vmem [#allocation5], 32
    %87 = vst [vmem:[%s86] sm:$0xff] %v85
    %v88 = vadd.f32 %v73, 0.0
    %s89 = scalar_lea.vmem [#allocation5], 40
    %90 = vst [vmem:[%s89] sm:$0xff] %v88
    // Predicated region
    $region10: #{tpu_custom_call.1} parent=1 // pred_check
      _
    $region11: #{tpu_custom_call.1} parent=1 // pred_check_branch
      %92 = sbr.rel (0) target = $region13
    $region12: #{tpu_custom_call.1} parent=1 // pred_region
      %s94 = ssub.s32 768, 768
      %95 = vsyncadd [#allocation4], %s94
      %s96 = sshll.u32 [#allocation5], 4
      %s97 = int_to_ptr.vmem [resolvable:$true] %s96
      %102 = dma.vmem_to_hbm [thread:$0]  %s97, 768, %s1, [#allocation4], 128, 128, 8
    $region13: #{tpu_custom_call.1} parent=1 // pred_fallthru
      _
    // Predicated region
    $region14: #{tpu_custom_call.1} parent=1 // pred_check
      _
    $region15: #{tpu_custom_call.1} parent=1 // pred_check_branch
      %104 = sbr.rel (0) target = $region17
    $region16: #{tpu_custom_call.1} parent=1 // pred_region
      %105 = dma.done [#allocation4], 768
    $region17: #{tpu_custom_call.1} parent=1 // pred_fallthru
      _
    %106 = vsyncpa [#allocation3], 1
    %107 = vsyncpa [#allocation4], 1

</llo_original>
